<compile_context>
chip_gen: v6e
topology: v6e:2x2x1
jax: 0.10.0
libtpu: 0.0.40
codegen_flags: <defaults>
</compile_context>

<pallas_src>
import jax
import jax.numpy as jnp
from jax.experimental import pallas as pl
from jax.experimental.pallas import tpu as pltpu


# ------------------------------ Pallas kernels -------------------------------

def _sigma_kernel(m_ref, sigma_ref):
    """Sigma = SPDLogCholesky(M): L = tril(M,-1) + diag(exp(diag(M))); L @ L.T."""
    m = m_ref[...]
    d = m.shape[0]
    row = jax.lax.broadcasted_iota(jnp.int32, (d, d), 0)
    col = jax.lax.broadcasted_iota(jnp.int32, (d, d), 1)
    l_mat = jnp.where(row > col, m, 0.0) + jnp.where(row == col, jnp.exp(m), 0.0)
    sigma_ref[...] = jnp.dot(l_mat, l_mat.T, preferred_element_type=jnp.float32)


def _output_kernel(k_ref, w_ref, xw_ref, out_ref):
    """One (j, row-tile) grid step of the fused output computation.

    Block shapes:
      k_ref  : (1, n_p, ti)   K[j][:, i0:i0+ti]; sublane axis = contraction
                              index l (uses K[j] symmetry), lane axis = rows i
      w_ref  : (1, d+1, n_p)  stacked [alpha[j] - c*t[j] ; c*bm[j]]
      xw_ref : (d+1, ti)      stacked [ones ; x.T[:, i0:i0+ti]]
      out_ref: (1, 1, ti)     output[j, i0:i0+ti]  (lane-dense store)
    """
    k_blk = k_ref[0]                                   # (n_p, ti)
    p = jnp.dot(w_ref[0], k_blk.astype(w_ref.dtype),
                preferred_element_type=jnp.float32)    # (d+1, ti) single MXU dot
    out_ref[0] = jnp.sum(xw_ref[...] * p, axis=0, keepdims=True)


# ------------------------------- host wrapper --------------------------------

def _choose_tile(n_p, k_bytes, vmem_budget):
    """Full K[j] slab if the double-buffered slab fits; else >=128-wide tiles."""
    k_budget = (vmem_budget * 3) // 5        # leave headroom for w/xw/out/scratch
    if 2 * k_bytes * n_p * n_p <= k_budget:
        return n_p                           # one contiguous slab per j
    ti = 128
    cap = min(1024, n_p)                     # 512-1024 wide tiles ~ HBM roofline
    while (ti * 2 <= cap and n_p % (ti * 2) == 0
           and 2 * k_bytes * n_p * (ti * 2) <= k_budget):
        ti *= 2
    return ti


def sigma_rkhs_forward(M, alpha, beta, K, x, gamma=1.0, row_tile=None,
                       k_dtype=jnp.float32,
                       vmem_limit_bytes=48 * 1024 * 1024):
    """Returns (Sigma: (d, d), output: (n, d)) exactly like the torch forward."""
    d, n, _ = K.shape
    assert x.shape == (n, d) and alpha.shape == (d, n) and beta.shape == (d, d, n)
    f32 = jnp.float32

    # --- Sigma: tiny grid-less kernel, runs exactly once ----------------------
    sigma = pl.pallas_call(
        _sigma_kernel,
        out_shape=jax.ShapeDtypeStruct((d, d), f32),
        in_specs=[pl.BlockSpec(memory_space=pltpu.MemorySpace.VMEM)],
        out_specs=pl.BlockSpec(memory_space=pltpu.MemorySpace.VMEM),
    )(M.astype(f32))

    # --- host-side prep: O(d^2*n), fused by XLA; keeps per-j invariants out of
    #     the inner grid loop, and pads n to a multiple of 128 (lane-dense) -----
    c = 2.0 / float(gamma) ** 2
    n_p = ((n + 127) // 128) * 128
    pad = n_p - n
    xt = x.astype(f32).T                                       # (d, n)
    alpha = alpha.astype(f32)
    beta = beta.astype(f32)
    K = K.astype(f32)
    if pad:
        K = jnp.pad(K, ((0, 0), (0, pad), (0, pad)))
        xt = jnp.pad(xt, ((0, 0), (0, pad)))
        alpha = jnp.pad(alpha, ((0, 0), (0, pad)))
        beta = jnp.pad(beta, ((0, 0), (0, 0), (0, pad)))
    K = K.astype(k_dtype)                  # optional bf16 streaming of K
    bm = jnp.where(jnp.eye(d, dtype=bool)[:, :, None], 0.0, beta)   # row a==j -> 0
    tvec = jnp.einsum('jal,al->jl', bm, xt)                          # (d, n_p)
    w = jnp.concatenate([(alpha - c * tvec)[:, None, :], c * bm], axis=1)  # (d, d+1, n_p)
    xw = jnp.concatenate([jnp.ones((1, n_p), f32), xt], axis=0)            # (d+1, n_p)

    # --- generation-aware VMEM budget & tile choice ---------------------------
    try:
        vmem_cap = pltpu.get_tpu_info().vmem_capacity_bytes
    except Exception:  # pragma: no cover - conservative fallback
        vmem_cap = 128 * 1024 * 1024
    vmem_limit = int(min(int(vmem_limit_bytes), (vmem_cap * 5) // 8))  # ~40 MiB on v7x
    k_bytes = jnp.dtype(k_dtype).itemsize
    ti = _choose_tile(n_p, k_bytes, vmem_limit) if row_tile is None else row_tile
    assert n_p % ti == 0 and ti % 128 == 0
    n_tiles = n_p // ti
    # TODO(synk): for very large n (even an (n_p, 128) K block over budget) add
    # an l-tile grid axis with a VMEM accumulator + pl.when init/finalize.

    flops = 2 * d * (d + 1) * n_p * n_p
    bytes_accessed = (k_bytes * d * n_p * n_p               # K streamed once
                      + 4 * (d * (d + 1) + (d + 1) + d) * n_p)  # w, xw, output
    out3 = pl.pallas_call(
        _output_kernel,
        out_shape=jax.ShapeDtypeStruct((d, 1, n_p), f32),
        grid_spec=pltpu.PrefetchScalarGridSpec(
            num_scalar_prefetch=0,
            grid=(d, n_tiles),
            in_specs=[
                pl.BlockSpec((1, n_p, ti), lambda j, t: (j, 0, t)),      # K[j] cols
                pl.BlockSpec((1, d + 1, n_p), lambda j, t: (j, 0, 0)),   # w[j]
                pl.BlockSpec((d + 1, ti), lambda j, t: (0, t)),          # [1; x.T]
            ],
            out_specs=pl.BlockSpec((1, 1, ti), lambda j, t: (j, 0, t)),
        ),
        compiler_params=pltpu.CompilerParams(
            dimension_semantics=("parallel", "parallel"),   # megacore-friendly
            vmem_limit_bytes=vmem_limit,
        ),
        cost_estimate=pl.CostEstimate(
            flops=flops, transcendentals=0, bytes_accessed=bytes_accessed),
    )(K, w, xw)

    output = jnp.transpose(out3[:, 0, :])[:n]              # (n, d)
    return sigma, output


# --------------- plain-JAX parameter / buffer setup (module __init__) --------

def reverse_spd_log_cholesky(d, key):
    cov = jax.random.uniform(key, (d, d), dtype=jnp.float32) * 0.1 - 0.05
    cov = jnp.triu(cov, k=1)
    sigma_init = cov + cov.T + jnp.eye(d, dtype=jnp.float32)
    L = jnp.linalg.cholesky(sigma_init)
    return jnp.tril(L, k=-1) + jnp.diag(jnp.log(jnp.diag(L)))


def precompute_K(x, gamma=1.0):
    """__init__ buffer: K[j,i,l] = exp(-sum_{k!=j}(x[i,k]-x[l,k])^2 / g^2)."""
    n, d = x.shape
    omega = jnp.ones((d, d), jnp.float32) - jnp.eye(d, dtype=jnp.float32)
    diff = x[:, None, :] - x[None, :, :]                       # (n, n, d)
    sq_dist = jnp.einsum('jk,ilk->jil', omega, diff ** 2)      # (d, n, n)
    K = jnp.exp(-sq_dist / gamma ** 2)
    return K, diff


def _reference(M, alpha, beta, K, diff, gamma):
    """Pure-JAX reference (materializes grad_K2 exactly like the torch module)."""
    d = M.shape[0]
    L = jnp.tril(M, k=-1) + jnp.diag(jnp.exp(jnp.diag(M)))
    sigma_ref = L @ L.T
    out1 = jnp.einsum('jl,jil->ij', alpha, K)
    grad_K1 = (-2.0 / gamma ** 2) * jnp.einsum('jil,ila->jila', K, diff)
    grad_K1 = jnp.where(jnp.eye(d, dtype=bool)[:, None, None, :], 0.0, grad_K1)
    grad_K2 = -grad_K1
    out2 = jnp.einsum('jal,jila->ij', beta, grad_K2)
    return sigma_ref, out1 + out2


if __name__ == "__main__":
    gamma = 2.0
    base_key = jax.random.PRNGKey(0)

    def run_case(n, d):
        kx, km, ka, kb = jax.random.split(jax.random.fold_in(base_key, n), 4)
        x = jax.random.normal(kx, (n, d), dtype=jnp.float32)
        M = reverse_spd_log_cholesky(d, km)
        # Module __init__ zero-initializes alpha/beta; use small non-zero values
        # so the kernel computes something non-trivial.
        alpha = 0.1 * jax.random.normal(ka, (d, n), dtype=jnp.float32)
        beta = 0.1 * jax.random.normal(kb, (d, d, n), dtype=jnp.float32)
        K, diff = precompute_K(x, gamma)

        sigma, output = sigma_rkhs_forward(M, alpha, beta, K, x, gamma=gamma)
        sigma, output = jax.block_until_ready((sigma, output))

        sigma_ref, out_ref = _reference(M, alpha, beta, K, diff, gamma)
        assert sigma.shape == (d, d) and output.shape == (n, d)
        assert jnp.allclose(sigma, sigma_ref, atol=1e-5, rtol=1e-5)
        max_err = float(jnp.max(jnp.abs(output - out_ref)))
        assert jnp.allclose(output, out_ref, atol=1e-3, rtol=1e-3), max_err

    run_case(n=256, d=6)     # 128-aligned n: full-slab K[j] path, no padding
    run_case(n=192, d=6)     # non-aligned n: exercises the pad-to-128 path

    print("KERNEL_OK")
</pallas_src>

<mosaic_0001>
module attributes {stable_mosaic.version = 11 : i64} {
  func.func @_sigma_kernel(%arg0: memref<6x6xf32, #tpu.memory_space<vmem>>, %arg1: memref<6x6xf32, #tpu.memory_space<vmem>>) attributes {dimension_semantics = [], scalar_prefetch = 0 : i64, scratch_operands = 0 : i64, tpu.core_type = #tpu.core_type<tc>} {
    %c0 = arith.constant 0 : index
    %c0_0 = arith.constant 0 : index
    %0 = vector.load %arg0[%c0, %c0_0] : memref<6x6xf32, #tpu.memory_space<vmem>>, vector<6x6xf32>
    %1 = tpu.iota {dimensions = array<i32: 0>} : vector<6x6xi32>
    %2 = tpu.iota {dimensions = array<i32: 1>} : vector<6x6xi32>
    %3 = arith.cmpi sgt, %1, %2 : vector<6x6xi32>
    %cst = arith.constant 0.000000e+00 : f32
    %4 = vector.broadcast %cst : f32 to vector<6x6xf32>
    %5 = arith.select %3, %0, %4 : vector<6x6xi1>, vector<6x6xf32>
    %6 = arith.cmpi eq, %1, %2 : vector<6x6xi32>
    %7 = math.exp %0 : vector<6x6xf32>
    %cst_1 = arith.constant 0.000000e+00 : f32
    %8 = vector.broadcast %cst_1 : f32 to vector<6x6xf32>
    %9 = arith.select %6, %7, %8 : vector<6x6xi1>, vector<6x6xf32>
    %10 = arith.addf %5, %9 : vector<6x6xf32>
    %11 = tpu.transpose %10, [1, 0] : vector<6x6xf32> -> vector<6x6xf32>
    %cst_2 = arith.constant dense<0.000000e+00> : vector<6x6xf32>
    %12 = tpu.matmul %10, %11, %cst_2 {dimension_numbers = #tpu.dot_dimension_numbers<[1], [0], [0], [1], [0, 0, 1, 1], [], []>} : vector<6x6xf32>, vector<6x6xf32>, vector<6x6xf32> -> vector<6x6xf32>
    %c0_3 = arith.constant 0 : index
    %c0_4 = arith.constant 0 : index
    %13 = vector.load %arg1[%c0_3, %c0_4] : memref<6x6xf32, #tpu.memory_space<vmem>>, vector<6x6xf32>
    tpu.vector_store %arg1[%c0_3, %c0_4], %12 {strides = array<i32>} : memref<6x6xf32, #tpu.memory_space<vmem>>, vector<6x6xf32>,
    return
  }
}

</mosaic_0001>

<llo_original>
// kernel: tpu_custom_call.1
$region0: #{tpu_custom_call.1}
  #allocation0 [shape = 'u32[]', space=smem, size = 0x4, offset = 0x4, fixed_abs, tag = 'smem constant byte address 0x4 - core index']
  #allocation1 [shape = 'u32[144,128]{1,0:T(1,128)}', space=vmem, size = 0x12000, scoped, tag = 'internal scratch']
  %s0 = inlined_call_operand.hbm [shape: f32[6,6], index: 0, kind: input, shape index: {}]
  %s1 = inlined_call_operand.hbm [shape: f32[6,6], index: 1, kind: output, shape index: {}]
  %s2 = sld [smem:[#allocation0]]
  $region18: #{tpu_custom_call.1} parent=0
    _
  %s4 = ssub.s32 1, %s2
  %s5 = scalar_select 0, %s4, %s2
  $region1: #{tpu_custom_call.1} parent=0
    #allocation2 [shape = 'u8[4096]{0}', space=vmem, size = 0x1000, scoped, tag = 'input window, operand 0, single buffered']
    #allocation3 [shape = 's32[1]{0}', space=sflag, size = 0x4, scoped, tag = 'scoped memory for tpu_custom_call.1']
    #allocation4 [shape = 's32[1]{0}', space=sflag, size = 0x4, scoped, tag = 'scoped memory for tpu_custom_call.1']
    #allocation5 [shape = 'u8[4096]{0}', space=vmem, size = 0x1000, scoped, tag = 'output window, operand 0, single buffered']
    %6 = vsyncpa [#allocation3], 0
    %7 = vsyncpa [#allocation4], 0
    // Predicated region
    $region2: #{tpu_custom_call.1} parent=1 // pred_check
      _
    $region3: #{tpu_custom_call.1} parent=1 // pred_check_branch
      %9 = sbr.rel (0) target = $region5
    $region4: #{tpu_custom_call.1} parent=1 // pred_region
      %s11 = ssub.s32 128, 128
      %12 = vsyncadd [#allocation3], %s11
      %s14 = sshll.u32 [#allocation2], 4
      %s15 = int_to_ptr.vmem [resolvable:$true] %s14
      %17 = dma.hbm_to_vmem [thread:$0]  %s0, 128, %s15, [#allocation3]
    $region5: #{tpu_custom_call.1} parent=1 // pred_fallthru
      _
    // Predicated region
    $region6: #{tpu_custom_call.1} parent=1 // pred_check
      _
    $region7: #{tpu_custom_call.1} parent=1 // pred_check_branch
      %19 = sbr.rel (0) target = $region9
    $region8: #{tpu_custom_call.1} parent=1 // pred_region
      %20 = dma.done [#allocation3], 128
    $region9: #{tpu_custom_call.1} parent=1 // pred_fallthru
      _
    %v21 = vld [vmem:[#allocation2] sm:$0x3f]
    %v22 = vlaneseq
    %v23 = vshrl.u32 %v22, 7
    %v24 = vlaneseq
    %v25 = vand.u32 %v24, 127
    %vm26 = vcmp.gt.s32.totalorder %v23, %v25
    %v27 = vsel %vm26, %v21, 0.0
    %vm28 = vcmp.eq.s32.totalorder %v23, %v25
    %v29 = vmul.f32 %v21, 1.442695
    %v30 = vpow.pop %v29
    %v31 = vsel %vm28, %v30, 0.0
    %v32 = vadd.f32 %v27, %v31
    %vm33 = vcmask 48128
    %v35 = vsel %vm33, %v32, 0
    %37 = vmatprep.subr.mxu0 0.0
    %38 = vmatpush1.xpose.msra.mxu0 0.0
    %39 = vmatprep.subr.mxu0 0.0
    %40 = vmatpush1.xpose.msra.mxu0 0.0
    %41 = vmatprep.subr.mxu0 0.0
    %42 = vmatpush1.xpose.msra.mxu0 0.0
    %43 = vmatprep.subr.mxu0 0.0
    %44 = vmatpush1.xpose.msra.mxu0 0.0
    %45 = vmatprep.subr.mxu0 0.0
    %46 = vmatpush1.xpose.msra.mxu0 0.0
    %47 = vmatprep.subr.mxu0 0.0
    %48 = vmatpush1.xpose.msra.mxu0 0.0
    %49 = vmatprep.subr.mxu0 0.0
    %50 = vmatpush1.xpose.msra.mxu0 0.0
    %51 = vmatprep.subr.mxu0 0.0
    %52 = vmatpush1.xpose.msra.mxu0 0.0
    %53 = vmatprep.subr.mxu0 0.0
    %54 = vmatpush1.xpose.msra.mxu0 0.0
    %55 = vmatprep.subr.mxu0 0.0
    %56 = vmatpush1.xpose.msra.mxu0 0.0
    %57 = vmatprep.subr.mxu0 0.0
    %58 = vmatpush1.xpose.msra.mxu0 0.0
    %59 = vmatprep.subr.mxu0 0.0
    %60 = vmatpush1.xpose.msra.mxu0 0.0
    %61 = vmatprep.subr.mxu0 0.0
    %62 = vmatpush1.xpose.msra.mxu0 0.0
    %63 = vmatprep.subr.mxu0 0.0
    %64 = vmatpush1.xpose.msra.mxu0 0.0
    %65 = vmatprep.subr.mxu0 0.0
    %66 = vmatpush1.xpose.msra.mxu0 0.0
    %67 = vmatprep.subr.mxu0 0.0
    %68 = vmatpush1.xpose.msra.mxu0 %v35
    %69 = vmatprep.subr.mxu0 0.0
    %70 = vmatpush2.xpose.msra.mxu0 0.0
    %71 = vmatprep.subr.mxu0 0.0
    %72 = vmatpush2.xpose.msra.mxu0 0.0
    %73 = vmatprep.subr.mxu0 0.0
    %74 = vmatpush2.xpose.msra.mxu0 0.0
    %75 = vmatprep.subr.mxu0 0.0
    %76 = vmatpush2.xpose.msra.mxu0 0.0
    %77 = vmatprep.subr.mxu0 0.0
    %78 = vmatpush2.xpose.msra.mxu0 0.0
    %79 = vmatprep.subr.mxu0 0.0
    %80 = vmatpush2.xpose.msra.mxu0 0.0
    %81 = vmatprep.subr.mxu0 0.0
    %82 = vmatpush2.xpose.msra.mxu0 0.0
    %83 = vmatprep.subr.mxu0 0.0
    %84 = vmatpush2.xpose.msra.mxu0 0.0
    %85 = vmatprep.subr.mxu0 0.0
    %86 = vmatpush2.xpose.msra.mxu0 0.0
    %87 = vmatprep.subr.mxu0 0.0
    %88 = vmatpush2.xpose.msra.mxu0 0.0
    %89 = vmatprep.subr.mxu0 0.0
    %90 = vmatpush2.xpose.msra.mxu0 0.0
    %91 = vmatprep.subr.mxu0 0.0
    %92 = vmatpush2.xpose.msra.mxu0 0.0
    %93 = vmatprep.subr.mxu0 0.0
    %94 = vmatpush2.xpose.msra.mxu0 0.0
    %95 = vmatprep.subr.mxu0 0.0
    %96 = vmatpush2.xpose.msra.mxu0 0.0
    %97 = vmatprep.subr.mxu0 0.0
    %98 = vmatpush2.xpose.msra.mxu0 0.0
    %99 = vmatprep.subr.mxu0 0.0
    %100 = vmatpush2.xpose.msra.mxu0 0.0
    %101 = vmatprep.mubr.f32.mxu0 0.0
    %102 = vmatmul.mubr.f32.gmra.mxu0 %v35
    %v103 = vpop.f32.mrf.mxu0
    %v104 = vadd.f32 0.0, %v103
    %v105 = vpop.f32.mrf.mxu0
    %106 = vdwg.mxu0
    %vm107 = vcmask 46080
    %108 = vst.msk [vmem:[#allocation5] sm:$0x3f] %vm107, %v104
    // Predicated region
    $region10: #{tpu_custom_call.1} parent=1 // pred_check
      _
    $region11: #{tpu_custom_call.1} parent=1 // pred_check_branch
      %110 = sbr.rel (0) target = $region13
    $region12: #{tpu_custom_call.1} parent=1 // pred_region
      %s112 = ssub.s32 128, 128
      %113 = vsyncadd [#allocation4], %s112
      %s115 = sshll.u32 [#allocation5], 4
      %s116 = int_to_ptr.vmem [resolvable:$true] %s115
      %118 = dma.vmem_to_hbm [thread:$0]  %s116, 128, %s1, [#allocation4]
    $region13: #{tpu_custom_call.1} parent=1 // pred_fallthru
      _
    // Predicated region
    $region14: #{tpu_custom_call.1} parent=1 // pred_check
      _
    $region15: #{tpu_custom_call.1} parent=1 // pred_check_branch
      %120 = sbr.rel (0) target = $region17
    $region16: #{tpu_custom_call.1} parent=1 // pred_region
      %121 = dma.done [#allocation4], 128
    $region17: #{tpu_custom_call.1} parent=1 // pred_fallthru
      _
    %122 = vsyncpa [#allocation3], 1
    %123 = vsyncpa [#allocation4], 1

</llo_original>
